<compile_context>
chip_gen: v7x
topology: tpu7x:2x2x1
jax: 0.10.0
libtpu: 0.0.40
codegen_flags: <defaults>
</compile_context>

<pallas_src>
import functools

import jax
import jax.numpy as jnp
from jax import lax
from jax.experimental import pallas as pl
from jax.experimental.pallas import tpu as pltpu


def conv_bn_relu_pool_kernel(lhs_ref, w_ref, shift_ref, o_ref, *, P, rows_out):
    # lhs_ref:   (P * rows_out, K*C_in)  im2col rows, ordered (pool_offset, batch, window)
    # w_ref:     (K*C_in, C_out)         conv weights with BN scale folded, (k, ci) row order
    # shift_ref: (1, C_out)              fused conv bias + BN shift (f32)
    # o_ref:     (rows_out, C_out)       pooled output rows, ordered (batch, window) — lane-dense
    y = jnp.dot(lhs_ref[...], w_ref[...], preferred_element_type=jnp.float32)
    y = jnp.maximum(y + shift_ref[...], 0.0)              # (P*rows_out, C_out), f32

    # MaxPool1d(P): P-1 elementwise maxes over contiguous, sublane-aligned row slices
    # (row order was arranged in the wrapper so no reshape/relayout is needed here).
    pooled = y[0:rows_out, :]
    for p in range(1, P):
        pooled = jnp.maximum(pooled, y[p * rows_out:(p + 1) * rows_out, :])

    o_ref[...] = pooled.astype(o_ref.dtype)


def conv_block_bn(x, weight, bias, gamma, beta, running_mean, running_var,
                  *, kernel_size, pool_size, eps=1e-5, compute_dtype=None):
    """x: (N, C_in, L) NCL like PyTorch.  Returns (N, C_out, L // pool_size)."""
    N, C_in, L = x.shape
    C_out = weight.shape[0]
    K = kernel_size
    P = pool_size
    L_out = L // P
    L_eff = L_out * P                      # conv positions past L_eff are dropped by the pool

    # 'same' padding for stride-1 conv (PyTorch puts the extra pad on the right for even K).
    pad_l = (K - 1) // 2
    pad_r = K - 1 - pad_l

    # bf16 inputs halve DMA bytes on v6e/v7x (accumulation stays f32); default keeps x.dtype.
    cdt = compute_dtype if compute_dtype is not None else x.dtype

    # Fold BN scale into the (tiny) weight tensor; (k, ci) row order to match the im2col.
    scale = (gamma / jnp.sqrt(running_var + eps)).astype(jnp.float32)           # (C_out,)
    w_scaled = weight.astype(jnp.float32) * scale[:, None, None]                # (C_out, C_in, K)
    w2 = jnp.transpose(w_scaled, (2, 1, 0)).reshape(K * C_in, C_out).astype(cdt)
    shift = ((bias - running_mean) * scale + beta).reshape(1, C_out).astype(jnp.float32)

    # Grid: single step unless the per-step work is big enough to pay the fixed step cost
    # (~0.35-0.6 us); only then does a 2-way 'parallel' split help on multi-TC parts (v7x).
    flops = 2 * N * L_eff * K * C_in * C_out
    num_steps = 1
    if N >= 2 and flops >= (1 << 23):
        bt = -(-N // 2)
        if (bt * L_out) % 8 == 0:          # keep blocks sublane-aligned when splitting
            num_steps = 2
    B_tile = -(-N // num_steps)            # ceil(N / num_steps)
    N_pad = B_tile * num_steps

    # Wrapper-side im2col (free at these sizes): build (N_pad, L_eff, K*C_in) patches,
    # then reorder rows to (step, pool_offset, batch_in_step, window) so the kernel's
    # MaxPool is contiguous row slices.
    x_p = jnp.pad(x, ((0, N_pad - N), (0, 0), (pad_l, pad_r))).astype(cdt)
    taps = [x_p[:, :, k:k + L_eff] for k in range(K)]          # K x (N_pad, C_in, L_eff)
    patches = jnp.stack(taps, axis=1)                          # (N_pad, K, C_in, L_eff)
    lhs = jnp.transpose(patches, (0, 3, 1, 2)).reshape(N_pad, L_eff, K * C_in)
    lhs = lhs.reshape(num_steps, B_tile, L_out, P, K * C_in)   # l = w*P + p
    lhs = jnp.transpose(lhs, (0, 3, 1, 2, 4))                  # (steps, P, B_tile, L_out, K*C_in)
    lhs = lhs.reshape(num_steps * P * B_tile * L_out, K * C_in)

    rows_out = B_tile * L_out
    kernel = functools.partial(conv_bn_relu_pool_kernel, P=P, rows_out=rows_out)

    out = pl.pallas_call(
        kernel,
        out_shape=jax.ShapeDtypeStruct((num_steps * rows_out, C_out), x.dtype),
        grid=(num_steps,),
        in_specs=[
            pl.BlockSpec((P * rows_out, K * C_in), lambda n: (n, 0)),
            pl.BlockSpec((K * C_in, C_out), lambda n: (0, 0)),
            pl.BlockSpec((1, C_out), lambda n: (0, 0)),
        ],
        out_specs=pl.BlockSpec((rows_out, C_out), lambda n: (n, 0)),
        compiler_params=pltpu.CompilerParams(
            dimension_semantics=("parallel",)),
    )(lhs, w2, shift)

    # Lane-dense kernel store; tiny NCL reshape/transpose done here in the wrapper.
    out = out.reshape(N_pad, L_out, C_out)[:N]                 # (N, L_out, C_out)
    return jnp.transpose(out, (0, 2, 1))                       # (N, C_out, L_out)


def _reference(x, weight, bias, gamma, beta, running_mean, running_var,
               *, kernel_size, pool_size, eps=1e-5):
    """Plain-JAX reference of the same eval-mode forward (for correctness check)."""
    K = kernel_size
    pad_l = (K - 1) // 2
    pad_r = K - 1 - pad_l
    y = lax.conv_general_dilated(
        x, weight, window_strides=(1,), padding=[(pad_l, pad_r)],
        dimension_numbers=('NCH', 'OIH', 'NCH'))
    y = y + bias[None, :, None]
    y = (y - running_mean[None, :, None]) / jnp.sqrt(running_var[None, :, None] + eps)
    y = y * gamma[None, :, None] + beta[None, :, None]
    y = jnp.maximum(y, 0.0)
    N, C, L = y.shape
    L_out = L // pool_size
    y = y[:, :, :L_out * pool_size].reshape(N, C, L_out, pool_size)
    return jnp.max(y, axis=-1)


if __name__ == "__main__":
    # Small shapes consistent with the module (input_dim=4, reduced out_dim).
    N, C_in, L = 2, 4, 48
    C_out, K, P = 32, 15, 3

    key = jax.random.PRNGKey(0)
    kx, kw, kb, kg, kbe, km, kv = jax.random.split(key, 7)

    x = jax.random.normal(kx, (N, C_in, L), jnp.float32)
    weight = jax.random.normal(kw, (C_out, C_in, K), jnp.float32) * 0.1
    bias = jax.random.normal(kb, (C_out,), jnp.float32) * 0.1
    gamma = jax.random.uniform(kg, (C_out,), jnp.float32, 0.5, 1.5)
    beta = jax.random.normal(kbe, (C_out,), jnp.float32) * 0.1
    running_mean = jax.random.normal(km, (C_out,), jnp.float32) * 0.1
    running_var = jax.random.uniform(kv, (C_out,), jnp.float32, 0.5, 1.5)

    out = conv_block_bn(x, weight, bias, gamma, beta, running_mean, running_var,
                        kernel_size=K, pool_size=P)
    out = jax.block_until_ready(out)

    ref = _reference(x, weight, bias, gamma, beta, running_mean, running_var,
                     kernel_size=K, pool_size=P)
    assert out.shape == (N, C_out, L // P), out.shape
    assert jnp.allclose(out, ref, atol=1e-4, rtol=1e-4), "mismatch vs reference"

    print("KERNEL_OK")
</pallas_src>

<mosaic_0001>
module attributes {stable_mosaic.version = 11 : i64} {
  func.func @conv_bn_relu_pool_kernel(%arg0: i32, %arg1: memref<96x60xf32, #tpu.memory_space<vmem>>, %arg2: memref<60x32xf32, #tpu.memory_space<vmem>>, %arg3: memref<1x32xf32, #tpu.memory_space<vmem>>, %arg4: memref<32x32xf32, #tpu.memory_space<vmem>>) attributes {dimension_semantics = [#tpu.dimension_semantics<parallel>], iteration_bounds = array<i64: 1>, scalar_prefetch = 0 : i64, scratch_operands = 0 : i64, tpu.core_type = #tpu.core_type<tc>, window_params = [{transform_indices = @transform_0, window_bounds = array<i64: 96, 60>}, {pipeline_mode = #tpu.pipeline_mode<synchronous>, transform_indices = @transform_1, window_bounds = array<i64: 60, 32>}, {pipeline_mode = #tpu.pipeline_mode<synchronous>, transform_indices = @transform_2, window_bounds = array<i64: 1, 32>}, {transform_indices = @transform_3, window_bounds = array<i64: 32, 32>}]} {
    %c0 = arith.constant 0 : index
    %c0_0 = arith.constant 0 : index
    %0 = vector.load %arg1[%c0, %c0_0] : memref<96x60xf32, #tpu.memory_space<vmem>>, vector<96x60xf32>
    %c0_1 = arith.constant 0 : index
    %c0_2 = arith.constant 0 : index
    %1 = vector.load %arg2[%c0_1, %c0_2] : memref<60x32xf32, #tpu.memory_space<vmem>>, vector<60x32xf32>
    %cst = arith.constant dense<0.000000e+00> : vector<96x32xf32>
    %2 = tpu.matmul %0, %1, %cst {dimension_numbers = #tpu.dot_dimension_numbers<[1], [0], [0], [1], [0, 0, 1, 1], [], []>} : vector<96x60xf32>, vector<60x32xf32>, vector<96x32xf32> -> vector<96x32xf32>
    %c0_3 = arith.constant 0 : index
    %c0_4 = arith.constant 0 : index
    %3 = vector.load %arg3[%c0_3, %c0_4] : memref<1x32xf32, #tpu.memory_space<vmem>>, vector<1x32xf32>
    %4 = vector.broadcast %3 : vector<1x32xf32> to vector<96x32xf32>
    %5 = arith.addf %2, %4 : vector<96x32xf32>
    %cst_5 = arith.constant 0.000000e+00 : f32
    %6 = vector.broadcast %cst_5 : f32 to vector<96x32xf32>
    %7 = arith.maximumf %5, %6 : vector<96x32xf32>
    %8 = vector.extract_strided_slice %7 {offsets = [0, 0], sizes = [32, 32], strides = [1, 1]} : vector<96x32xf32> to vector<32x32xf32>
    %9 = vector.extract_strided_slice %7 {offsets = [32, 0], sizes = [32, 32], strides = [1, 1]} : vector<96x32xf32> to vector<32x32xf32>
    %10 = arith.maximumf %8, %9 : vector<32x32xf32>
    %11 = vector.extract_strided_slice %7 {offsets = [64, 0], sizes = [32, 32], strides = [1, 1]} : vector<96x32xf32> to vector<32x32xf32>
    %12 = arith.maximumf %10, %11 : vector<32x32xf32>
    %c0_6 = arith.constant 0 : index
    %c0_7 = arith.constant 0 : index
    %13 = vector.load %arg4[%c0_6, %c0_7] : memref<32x32xf32, #tpu.memory_space<vmem>>, vector<32x32xf32>
    tpu.vector_store %arg4[%c0_6, %c0_7], %12 {strides = array<i32>} : memref<32x32xf32, #tpu.memory_space<vmem>>, vector<32x32xf32>,
    return
  }
  func.func @transform_0(%arg0: i32) -> (i32, i32) {
    %c0_i32 = arith.constant 0 : i32
    %c0_i32_0 = arith.constant 0 : i32
    return %arg0, %c0_i32 : i32, i32
  }
  func.func @transform_1(%arg0: i32) -> (i32, i32) {
    %c0_i32 = arith.constant 0 : i32
    %c0_i32_0 = arith.constant 0 : i32
    %c0_i32_1 = arith.constant 0 : i32
    return %c0_i32, %c0_i32_0 : i32, i32
  }
  func.func @transform_2(%arg0: i32) -> (i32, i32) {
    %c0_i32 = arith.constant 0 : i32
    %c0_i32_0 = arith.constant 0 : i32
    %c0_i32_1 = arith.constant 0 : i32
    return %c0_i32, %c0_i32_0 : i32, i32
  }
  func.func @transform_3(%arg0: i32) -> (i32, i32) {
    %c0_i32 = arith.constant 0 : i32
    %c0_i32_0 = arith.constant 0 : i32
    return %arg0, %c0_i32 : i32, i32
  }
}

</mosaic_0001>

<llo_original>
// kernel: tpu_custom_call.1
$region0: #{tpu_custom_call.1}
  #allocation0 [shape = 'u32[]', space=smem, size = 0x4, offset = 0x4, fixed_abs, tag = 'smem constant byte address 0x4 - core index']
  #allocation1 [shape = 'u32[144,128]{1,0:T(1,128)}', space=vmem, size = 0x12000, scoped, tag = 'internal scratch']
  %s0 = inlined_call_operand.vmem [shape: f32[96,60], index: 0, kind: input, shape index: {}]
  %s1 = inlined_call_operand.vmem [shape: f32[60,32], index: 1, kind: input, shape index: {}]
  %s2 = inlined_call_operand.vmem [shape: f32[1,32], index: 2, kind: input, shape index: {}]
  %s3 = inlined_call_operand.hbm [shape: f32[32,32], index: 3, kind: output, shape index: {}]
  %s4 = sld [smem:[#allocation0]]
  $region22: #{tpu_custom_call.1} parent=0
    _
  %s6 = ssub.s32 1, %s4
  %s7 = scalar_select 0, %s6, %s4
  $region1: #{tpu_custom_call.1} parent=0
    #allocation2 [shape = 'u8[16384]{0}', space=vmem, size = 0x4000, scoped, tag = 'output window, operand 0, single buffered']
    #allocation3 [shape = 's32[1]{0}', space=sflag, size = 0x4, scoped, tag = 'scoped memory for tpu_custom_call.1']
    %8 = vsyncpa [#allocation3], 0
    // Predicated region
    $region2: #{tpu_custom_call.1} parent=1 // pred_check
      _
    $region3: #{tpu_custom_call.1} parent=1 // pred_check_branch
      %10 = sbr.rel (0) target = $region5
    $region4: #{tpu_custom_call.1} parent=1 // pred_region
      _
    $region5: #{tpu_custom_call.1} parent=1 // pred_fallthru
      _
    // Predicated region
    $region6: #{tpu_custom_call.1} parent=1 // pred_check
      _
    $region7: #{tpu_custom_call.1} parent=1 // pred_check_branch
      %12 = sbr.rel (0) target = $region9
    $region8: #{tpu_custom_call.1} parent=1 // pred_region
      _
    $region9: #{tpu_custom_call.1} parent=1 // pred_fallthru
      _
    // Predicated region
    $region10: #{tpu_custom_call.1} parent=1 // pred_check
      _
    $region11: #{tpu_custom_call.1} parent=1 // pred_check_branch
      %14 = sbr.rel (0) target = $region13
    $region12: #{tpu_custom_call.1} parent=1 // pred_region
      _
    $region13: #{tpu_custom_call.1} parent=1 // pred_fallthru
      _
    %v15 = vld [vmem:[%s0] sm:$0xff]
    %v16 = vld [vmem:[%s0 + $0x8] sm:$0xff]
    %v17 = vld [vmem:[%s0 + $0x10] sm:$0xff]
    %v18 = vld [vmem:[%s0 + $0x18] sm:$0xff]
    %v19 = vld [vmem:[%s0 + $0x20] sm:$0xff]
    %v20 = vld [vmem:[%s0 + $0x28] sm:$0xff]
    %v21 = vld [vmem:[%s0 + $0x30] sm:$0xff]
    %v22 = vld [vmem:[%s0 + $0x38] sm:$0xff]
    %v23 = vld [vmem:[%s0 + $0x40] sm:$0xff]
    %v24 = vld [vmem:[%s0 + $0x48] sm:$0xff]
    %v25 = vld [vmem:[%s0 + $0x50] sm:$0xff]
    %v26 = vld [vmem:[%s0 + $0x58] sm:$0xff]
    %v27 = vld [vmem:[%s1] sm:$0xff]
    %v28 = vld [vmem:[%s1 + $0x8] sm:$0xff]
    %v29 = vld [vmem:[%s1 + $0x10] sm:$0xff]
    %v30 = vld [vmem:[%s1 + $0x18] sm:$0xff]
    %v31 = vld [vmem:[%s1 + $0x20] sm:$0xff]
    %v32 = vld [vmem:[%s1 + $0x28] sm:$0xff]
    %v33 = vld [vmem:[%s1 + $0x30] sm:$0xff]
    %v34 = vld [vmem:[%s1 + $0x38] sm:$0xf]
    %v35 = vld [vmem:[%s2] sm:$0x1]
    %v37 = vlaneseq
    %v38 = vshrl.u32 %v37, 7
    %v39 = vsub.s32 0, %v38
    %v40 = vrot.slane %v35, %v39
    %vm42 = vcmask 490496
    %v44 = vsel %vm42, %v15, 0
    %v47 = vsel %vm42, %v16, 0
    %v50 = vsel %vm42, %v17, 0
    %v53 = vsel %vm42, %v18, 0
    %v56 = vsel %vm42, %v19, 0
    %v59 = vsel %vm42, %v20, 0
    %v62 = vsel %vm42, %v21, 0
    %v65 = vsel %vm42, %v22, 0
    %v68 = vsel %vm42, %v23, 0
    %v71 = vsel %vm42, %v24, 0
    %v74 = vsel %vm42, %v25, 0
    %v77 = vsel %vm42, %v26, 0
    %vm79 = vcmask 1043456
    %v81 = vsel %vm79, %v34, 0
    %83 = vmatprep.subr.mxu0 0.0
    %84 = vmatpush1.msra.mxu0 %v27
    %85 = vmatprep.subr.mxu0 0.0
    %86 = vmatpush1.msra.mxu0 %v28
    %87 = vmatprep.subr.mxu0 0.0
    %88 = vmatpush1.msra.mxu0 %v29
    %89 = vmatprep.subr.mxu0 0.0
    %90 = vmatpush1.msra.mxu0 %v30
    %91 = vmatprep.subr.mxu0 0.0
    %92 = vmatpush1.msra.mxu0 %v31
    %93 = vmatprep.subr.mxu0 0.0
    %94 = vmatpush1.msra.mxu0 %v32
    %95 = vmatprep.subr.mxu0 0.0
    %96 = vmatpush1.msra.mxu0 %v33
    %97 = vmatprep.subr.mxu0 0.0
    %98 = vmatpush1.msra.mxu0 %v81
    %99 = vmatprep.subr.mxu0 0.0
    %100 = vmatpush1.msra.mxu0 0.0
    %101 = vmatprep.subr.mxu0 0.0
    %102 = vmatpush1.msra.mxu0 0.0
    %103 = vmatprep.subr.mxu0 0.0
    %104 = vmatpush1.msra.mxu0 0.0
    %105 = vmatprep.subr.mxu0 0.0
    %106 = vmatpush1.msra.mxu0 0.0
    %107 = vmatprep.subr.mxu0 0.0
    %108 = vmatpush1.msra.mxu0 0.0
    %109 = vmatprep.subr.mxu0 0.0
    %110 = vmatpush1.msra.mxu0 0.0
    %111 = vmatprep.subr.mxu0 0.0
    %112 = vmatpush1.msra.mxu0 0.0
    %113 = vmatprep.subr.mxu0 0.0
    %114 = vmatpush1.msra.mxu0 0.0
    %115 = vmatprep.subr.mxu0 0.0
    %116 = vmatpush1.msra.mxu0 0.0
    %117 = vmatprep.subr.mxu0 0.0
    %118 = vmatpush1.msra.mxu0 0.0
    %119 = vmatprep.subr.mxu0 0.0
    %120 = vmatpush1.msra.mxu0 0.0
    %121 = vmatprep.subr.mxu0 0.0
    %122 = vmatpush1.msra.mxu0 0.0
    %123 = vmatprep.subr.mxu0 0.0
    %124 = vmatpush1.msra.mxu0 0.0
    %125 = vmatprep.subr.mxu0 0.0
    %126 = vmatpush1.msra.mxu0 0.0
    %127 = vmatprep.subr.mxu0 0.0
    %128 = vmatpush1.msra.mxu0 0.0
    %129 = vmatprep.subr.mxu0 0.0
    %130 = vmatpush1.msra.mxu0 0.0
    %131 = vmatprep.subr.mxu0 0.0
    %132 = vmatpush1.msra.mxu0 0.0
    %133 = vmatprep.subr.mxu0 0.0
    %134 = vmatpush1.msra.mxu0 0.0
    %135 = vmatprep.subr.mxu0 0.0
    %136 = vmatpush1.msra.mxu0 0.0
    %137 = vmatprep.subr.mxu0 0.0
    %138 = vmatpush1.msra.mxu0 0.0
    %139 = vmatprep.subr.mxu0 0.0
    %140 = vmatpush1.msra.mxu0 0.0
    %141 = vmatprep.subr.mxu0 0.0
    %142 = vmatpush1.msra.mxu0 0.0
    %143 = vmatprep.subr.mxu0 0.0
    %144 = vmatpush1.msra.mxu0 0.0
    %145 = vmatprep.subr.mxu0 0.0
    %146 = vmatpush1.msra.mxu0 0.0
    %147 = vmatprep.mubr.f32.mxu0 0.0
    %148 = vmatmul.mubr.f32.gmra.mrb[0].mxu0 %v44
    %v149 = vpop.f32.mrb[0].mxu0
    %v150 = vadd.f32 %v40, %v149
    %v151 = vpop.f32.mrb[0].mxu0
    %152 = vmatprep.mubr.f32.mxu0 0.0
    %153 = vmatmul.mubr.f32.gmra.mrb[0].mxu0 %v47
    %v154 = vpop.f32.mrb[0].mxu0
    %v155 = vadd.f32 %v40, %v154
    %v156 = vpop.f32.mrb[0].mxu0
    %157 = vmatprep.mubr.f32.mxu0 0.0
    %158 = vmatmul.mubr.f32.gmra.mrb[0].mxu0 %v50
    %v159 = vpop.f32.mrb[0].mxu0
    %v160 = vadd.f32 %v40, %v159
    %v161 = vpop.f32.mrb[0].mxu0
    %162 = vmatprep.mubr.f32.mxu0 0.0
    %163 = vmatmul.mubr.f32.gmra.mrb[0].mxu0 %v53
    %v164 = vpop.f32.mrb[0].mxu0
    %v165 = vadd.f32 %v40, %v164
    %v166 = vpop.f32.mrb[0].mxu0
    %167 = vmatprep.mubr.f32.mxu0 0.0
    %168 = vmatmul.mubr.f32.gmra.mrb[0].mxu0 %v56
    %v169 = vpop.f32.mrb[0].mxu0
    %v170 = vadd.f32 %v40, %v169
    %v171 = vpop.f32.mrb[0].mxu0
    %172 = vmatprep.mubr.f32.mxu0 0.0
    %173 = vmatmul.mubr.f32.gmra.mrb[0].mxu0 %v59
    %v174 = vpop.f32.mrb[0].mxu0
    %v175 = vadd.f32 %v40, %v174
    %v176 = vpop.f32.mrb[0].mxu0
    %177 = vmatprep.mubr.f32.mxu0 0.0
    %178 = vmatmul.mubr.f32.gmra.mrb[0].mxu0 %v62
    %v179 = vpop.f32.mrb[0].mxu0
    %v180 = vadd.f32 %v40, %v179
    %v181 = vpop.f32.mrb[0].mxu0
    %182 = vmatprep.mubr.f32.mxu0 0.0
    %183 = vmatmul.mubr.f32.gmra.mrb[0].mxu0 %v65
    %v184 = vpop.f32.mrb[0].mxu0
    %v185 = vadd.f32 %v40, %v184
    %v186 = vpop.f32.mrb[0].mxu0
    %187 = vmatprep.mubr.f32.mxu0 0.0
    %188 = vmatmul.mubr.f32.gmra.mrb[0].mxu0 %v68
    %v189 = vpop.f32.mrb[0].mxu0
    %v190 = vadd.f32 %v40, %v189
    %v191 = vpop.f32.mrb[0].mxu0
    %192 = vmatprep.mubr.f32.mxu0 0.0
    %193 = vmatmul.mubr.f32.gmra.mrb[0].mxu0 %v71
    %v194 = vpop.f32.mrb[0].mxu0
    %v195 = vadd.f32 %v40, %v194
    %v196 = vpop.f32.mrb[0].mxu0
    %197 = vmatprep.mubr.f32.mxu0 0.0
    %198 = vmatmul.mubr.f32.gmra.mrb[0].mxu0 %v74
    %v199 = vpop.f32.mrb[0].mxu0
    %v200 = vadd.f32 %v40, %v199
    %v201 = vpop.f32.mrb[0].mxu0
    %202 = vmatprep.mubr.f32.mxu0 0.0
    %203 = vmatmul.mubr.f32.gmra.mrb[0].mxu0 %v77
    %v204 = vpop.f32.mrb[0].mxu0
    %v205 = vadd.f32 %v40, %v204
    %v206 = vpop.f32.mrb[0].mxu0
    %207 = vdwg.mxu0
    %v208 = vmax.f32 %v150, 0.0
    %v209 = vmax.f32 %v155, 0.0
    %v210 = vmax.f32 %v160, 0.0
    %v211 = vmax.f32 %v165, 0.0
    %v212 = vmax.f32 %v170, 0.0
    %v213 = vmax.f32 %v175, 0.0
    %v214 = vmax.f32 %v180, 0.0
    %v215 = vmax.f32 %v185, 0.0
    %v216 = vmax.f32 %v190, 0.0
    %v217 = vmax.f32 %v195, 0.0
    %v218 = vmax.f32 %v200, 0.0
    %v219 = vmax.f32 %v205, 0.0
    %v220 = vmax.f32 %v208, %v212
    %v221 = vmax.f32 %v209, %v213
    %v222 = vmax.f32 %v210, %v214
    %v223 = vmax.f32 %v211, %v215
    %v224 = vmax.f32 %v220, %v216
    %v225 = vmax.f32 %v221, %v217
    %v226 = vmax.f32 %v222, %v218
    %v227 = vmax.f32 %v223, %v219
    %vm228 = vcmask 261120
    %229 = vst.msk [vmem:[#allocation2] sm:$0xff] %vm228, %v224
    %230 = vst.msk [vmem:[#allocation2 + $0x8] sm:$0xff] %vm228, %v225
    %231 = vst.msk [vmem:[#allocation2 + $0x10] sm:$0xff] %vm228, %v226
    %232 = vst.msk [vmem:[#allocation2 + $0x18] sm:$0xff] %vm228, %v227
    // Predicated region
    $region14: #{tpu_custom_call.1} parent=1 // pred_check
      _
    $region15: #{tpu_custom_call.1} parent=1 // pred_check_branch
      %234 = sbr.rel (0) target = $region17
    $region16: #{tpu_custom_call.1} parent=1 // pred_region
      %s236 = ssub.s32 512, 512
      %237 = vsyncadd [#allocation3], %s236
      %s238 = sshll.u32 [#allocation2], 4
      %s239 = int_to_ptr.vmem [resolvable:$true] %s238
      %244 = dma.vmem_to_hbm [thread:$0]  %s239, 512, %s3, [#allocation3], 128, 128, 8
    $region17: #{tpu_custom_call.1} parent=1 // pred_fallthru
      _
    // Predicated region
    $region18: #{tpu_custom_call.1} parent=1 // pred_check
      _
    $region19: #{tpu_custom_call.1} parent=1 // pred_check_branch
      %246 = sbr.rel (0) target = $region21
    $region20: #{tpu_custom_call.1} parent=1 // pred_region
      %247 = dma.done [#allocation3], 512
    $region21: #{tpu_custom_call.1} parent=1 // pred_fallthru
      _
    %248 = vsyncpa [#allocation3], 1

</llo_original>
